<compile_context>
chip_gen: v5e
topology: v5e:2x2
jax: 0.10.0
libtpu: 0.0.40
codegen_flags: <defaults>
</compile_context>

<pallas_src>
import math

import jax
import jax.numpy as jnp
import numpy as np
from jax.experimental import pallas as pl
from jax.experimental.pallas import tpu as pltpu


# ------------------------------------------------------------------ #
# Linear projection kernels (M-tiled, weight resident, MXU path)     #
# ------------------------------------------------------------------ #
def _linear_kernel(x_ref, w_ref, b_ref, o_ref):
    acc = jnp.dot(x_ref[...], w_ref[...], preferred_element_type=jnp.float32)
    o_ref[...] = (acc + b_ref[...]).astype(o_ref.dtype)


def _masked_linear_kernel(x_ref, w_ref, b_ref, s_ref, o_ref):
    acc = jnp.dot(x_ref[...], w_ref[...], preferred_element_type=jnp.float32)
    acc = (acc + b_ref[...]) * s_ref[...].astype(jnp.float32)
    o_ref[...] = acc.astype(o_ref.dtype)


def pallas_linear(x, w, b, *, out_dtype=None, mxu_dtype=jnp.bfloat16,
                  tile_m=1024, row_scale=None):
    """y = (x @ w + b) [* row_scale].  x:(M,Cin), w:(Cin,Cout), b:(Cout,), row_scale:(M,1)."""
    M, Cin = x.shape
    Cout = w.shape[1]
    out_dtype = out_dtype or x.dtype
    tm = M if M <= tile_m else tile_m          # tile_m is a multiple of 8

    x = x.astype(mxu_dtype)                     # no-op when already bf16/f32
    w = w.astype(mxu_dtype)                     # weights pre-cast once, outside kernel
    b2 = b.reshape(1, Cout).astype(jnp.float32)

    in_specs = [
        pl.BlockSpec((tm, Cin), lambda i: (i, 0)),    # activations: M-tiled
        pl.BlockSpec((Cin, Cout), lambda i: (0, 0)),  # weight: resident
        pl.BlockSpec((1, Cout), lambda i: (0, 0)),    # bias: resident
    ]
    args = [x, w, b2]
    kernel = _linear_kernel
    if row_scale is not None:                   # fused padding-mask zeroing
        in_specs.append(pl.BlockSpec((tm, 1), lambda i: (i, 0)))
        args.append(row_scale)
        kernel = _masked_linear_kernel

    return pl.pallas_call(
        kernel,
        out_shape=jax.ShapeDtypeStruct((M, Cout), out_dtype),
        grid=(pl.cdiv(M, tm),),
        in_specs=in_specs,
        out_specs=pl.BlockSpec((tm, Cout), lambda i: (i, 0)),
        compiler_params=pltpu.CompilerParams(dimension_semantics=("parallel",)),
    )(*args)


# ------------------------------------------------------------------ #
# Deformable sampling kernel: one (batch, query-tile) block per step #
# ------------------------------------------------------------------ #
def _row_chunk(H, W, target=2048):
    """Rows per K-chunk so that (rows*W) % 8 == 0 where possible and rows*W ~ target."""
    step = 8 // math.gcd(W, 8)
    ch = max(1, target // W)
    ch = max(step, (ch // step) * step)
    return min(H, ch)


def _make_deform_kernel(n_heads, n_levels, n_points, d_head,
                        spatial_shapes, level_start, ref_dim, row_chunks):
    """Kernel refs (per grid step, batch dim squeezed):
         ref_ref : (TQ, L*ref_dim)          f32   reference points
         so_ref  : (TQ, H*L*2*P)            f32   offsets, layout (head, level, {x,y}, point)
         aw_ref  : (TQ, H*L*P)               f32   raw attention logits (head, level, point)
         val_ref : (Len_pad, C)              bf16  head-interleaved value slab (level-padded)
         out_ref : (TQ, C)                   bf16  lane-dense output
    """
    LP = n_levels * n_points

    def kernel(ref_ref, so_ref, aw_ref, val_ref, out_ref):
        TQ = aw_ref.shape[0]
        refp = ref_ref[...]                                    # (TQ, L*ref_dim)

        for h in range(n_heads):
            # ---- lazy per-head softmax over (levels*points) ----
            lg = aw_ref[:, h * LP:(h + 1) * LP]
            e = jnp.exp(lg - jnp.max(lg, axis=-1, keepdims=True))
            attn_h = e * pl.reciprocal(jnp.sum(e, axis=-1, keepdims=True), approx=True)

            acc = jnp.zeros((TQ, d_head), jnp.float32)         # single live accumulator

            for l in range(n_levels):
                H, W = spatial_shapes[l]
                start = level_start[l]
                CH = row_chunks[l]
                base = (h * n_levels + l) * 2 * n_points
                ox = so_ref[:, base:base + n_points]               # (TQ, P)
                oy = so_ref[:, base + n_points:base + 2 * n_points]
                aw_hl = attn_h[:, l * n_points:(l + 1) * n_points]  # (TQ, P)

                if ref_dim == 2:
                    lx = refp[:, l * 2:l * 2 + 1] + ox * (1.0 / W)
                    ly = refp[:, l * 2 + 1:l * 2 + 2] + oy * (1.0 / H)
                else:  # ref_dim == 4
                    lx = (refp[:, l * 4:l * 4 + 1]
                          + ox * (0.5 / n_points) * refp[:, l * 4 + 2:l * 4 + 3])
                    ly = (refp[:, l * 4 + 1:l * 4 + 2]
                          + oy * (0.5 / n_points) * refp[:, l * 4 + 3:l * 4 + 4])

                # grid_sample(align_corners=False, padding_mode='zeros')
                x = lx * W - 0.5
                y = ly * H - 0.5
                x0f = jnp.floor(x)
                y0f = jnp.floor(y)
                dx = x - x0f
                dy = y - y0f
                x0 = x0f.astype(jnp.int32)
                y0 = y0f.astype(jnp.int32)

                # Attention-weighted separable x-weights, once per (head, level).
                # Out-of-range corners simply never match the iota -> zero padding free.
                col = jax.lax.broadcasted_iota(jnp.int32, (TQ, W), 1)
                wx = []
                for p in range(n_points):
                    x0p = x0[:, p:p + 1]
                    dxp = dx[:, p:p + 1]
                    w_p = ((col == x0p).astype(jnp.float32) * (1.0 - dxp)
                           + (col == x0p + 1).astype(jnp.float32) * dxp)
                    wx.append(w_p * aw_hl[:, p:p + 1])

                # ---- chunk the level rows (K axis); S built per chunk ----
                for r0 in range(0, H, CH):
                    rows = min(CH, H - r0)
                    riota = r0 + jax.lax.broadcasted_iota(jnp.int32, (TQ, rows), 1)
                    S = jnp.zeros((TQ, rows, W), jnp.float32)
                    for p in range(n_points):
                        y0p = y0[:, p:p + 1]
                        dyp = dy[:, p:p + 1]
                        wy = ((riota == y0p).astype(jnp.float32) * (1.0 - dyp)
                              + (riota == y0p + 1).astype(jnp.float32) * dyp)
                        S = S + wy[:, :, None] * wx[p][:, None, :]

                    off = start + r0 * W
                    v_chunk = val_ref[off:off + rows * W, h * d_head:(h + 1) * d_head]
                    acc = acc + jnp.dot(
                        S.reshape(TQ, rows * W).astype(jnp.bfloat16),
                        v_chunk,
                        preferred_element_type=jnp.float32,
                    )

            # store this head's slice immediately (lane-dense bf16 block)
            out_ref[:, h * d_head:(h + 1) * d_head] = acc.astype(out_ref.dtype)

    return kernel


# ------------------------------------------------------------------ #
# MSDeformAttn forward (Pallas)
# ------------------------------------------------------------------ #
def ms_deform_attn_forward(
    params,
    query,
    reference_points,
    input_flatten,
    input_spatial_shapes,
    input_level_start_index,
    input_padding_mask=None,
    *,
    n_heads,
    n_levels,
    n_points,
):
    N, Lq, C = query.shape
    _, Len_in, _ = input_flatten.shape
    d_head = C // n_heads
    HLP = n_heads * n_levels * n_points

    # Spatial metadata is compile-time static (per-level shapes known at trace time).
    ss = np.asarray(input_spatial_shapes).astype(np.int64)
    ls = np.asarray(input_level_start_index).astype(np.int64)
    spatial_shapes = tuple((int(ss[l, 0]), int(ss[l, 1])) for l in range(n_levels))
    orig_start = tuple(int(ls[l]) for l in range(n_levels))
    assert sum(h * w for h, w in spatial_shapes) == Len_in

    # ---- sublane-aligned (multiple-of-8) per-level layout for the value slab ----
    hw = [h * w for h, w in spatial_shapes]
    hw_pad = [-(-s // 8) * 8 for s in hw]
    pad_start = []
    off = 0
    for s in hw_pad:
        pad_start.append(off)
        off += s
    Len_pad = off

    x_bf = input_flatten.astype(jnp.bfloat16)          # bf16 read for the mem-bound linear
    keep = None
    if input_padding_mask is not None:
        keep = jnp.logical_not(input_padding_mask).astype(jnp.bfloat16)[..., None]
    if Len_pad != Len_in or list(orig_start) != pad_start:
        segs, ksegs = [], []
        for l in range(n_levels):
            s0 = orig_start[l]
            seg = x_bf[:, s0:s0 + hw[l], :]
            pad = hw_pad[l] - hw[l]
            if pad:
                seg = jnp.pad(seg, ((0, 0), (0, pad), (0, 0)))
            segs.append(seg)
            if keep is not None:
                kseg = keep[:, s0:s0 + hw[l], :]
                if pad:
                    kseg = jnp.pad(kseg, ((0, 0), (0, pad), (0, 0)))
                ksegs.append(kseg)
        x_bf = jnp.concatenate(segs, axis=1)
        if keep is not None:
            keep = jnp.concatenate(ksegs, axis=1)

    # ---- value projection: bf16 out, padding-mask zeroing fused into the kernel ----
    value = pallas_linear(
        x_bf.reshape(N * Len_pad, C), params["vp_w"], params["vp_b"],
        out_dtype=jnp.bfloat16, mxu_dtype=jnp.bfloat16,
        row_scale=None if keep is None else keep.reshape(N * Len_pad, 1),
    ).reshape(N, Len_pad, C)

    # ---- fused sampling_offsets + attention_weights projection ----
    # Permute offset columns at trace time to (head, level, {x,y}, point) so the
    # kernel reads contiguous (TQ, P) blocks.  f32: tiny & precision-sensitive.
    so_w = jnp.transpose(
        params["so_w"].reshape(C, n_heads, n_levels, n_points, 2), (0, 1, 2, 4, 3)
    ).reshape(C, 2 * HLP)
    so_b = jnp.transpose(
        params["so_b"].reshape(n_heads, n_levels, n_points, 2), (0, 1, 3, 2)
    ).reshape(2 * HLP)
    sab_w = jnp.concatenate([so_w, params["aw_w"]], axis=1)
    sab_b = jnp.concatenate([so_b, params["aw_b"]], axis=0)
    sab = pallas_linear(query.reshape(N * Lq, C), sab_w, sab_b,
                        out_dtype=jnp.float32, mxu_dtype=jnp.float32)
    so = sab[:, :2 * HLP].reshape(N, Lq, 2 * HLP)
    aw_logits = sab[:, 2 * HLP:].reshape(N, Lq, HLP)

    ref_dim = reference_points.shape[-1]
    if ref_dim not in (2, 4):
        raise ValueError("Last dim of reference_points must be 2 or 4")
    refp = reference_points.reshape(N, Lq, n_levels * ref_dim).astype(jnp.float32)

    # ---- generation-dependent VMEM budget & query tile ----
    try:
        vmem_cap = int(pltpu.get_tpu_info().vmem_capacity_bytes)
    except Exception:
        vmem_cap = 64 * 1024 * 1024
    if vmem_cap >= 100 * 1024 * 1024:      # v5e / v6e: 128 MiB physical VMEM
        vmem_limit, tq_cap = 96 * 1024 * 1024, 512
    else:                                   # v7x: 64 MiB per core
        vmem_limit, tq_cap = 48 * 1024 * 1024, 256
    TQ = Lq if Lq <= tq_cap else tq_cap

    row_chunks = tuple(_row_chunk(h, w) for (h, w) in spatial_shapes)
    kernel = _make_deform_kernel(n_heads, n_levels, n_points, d_head,
                                 spatial_shapes, tuple(pad_start), ref_dim, row_chunks)
    samp = pl.pallas_call(
        kernel,
        out_shape=jax.ShapeDtypeStruct((N, Lq, C), jnp.bfloat16),
        grid=(N, pl.cdiv(Lq, TQ)),
        in_specs=[
            pl.BlockSpec((None, TQ, n_levels * ref_dim), lambda n, t: (n, t, 0)),
            pl.BlockSpec((None, TQ, 2 * HLP), lambda n, t: (n, t, 0)),
            pl.BlockSpec((None, TQ, HLP), lambda n, t: (n, t, 0)),
            # value slab: revisited (fetched once per batch) across the query-tile axis
            pl.BlockSpec((None, Len_pad, C), lambda n, t: (n, 0, 0)),
        ],
        out_specs=pl.BlockSpec((None, TQ, C), lambda n, t: (n, t, 0)),
        compiler_params=pltpu.CompilerParams(
            dimension_semantics=("parallel", "parallel"),
            vmem_limit_bytes=vmem_limit,
        ),
    )(refp, so, aw_logits, value)

    # ---- output projection (reads bf16 samp, emits query dtype) ----
    return pallas_linear(
        samp.reshape(N * Lq, C), params["op_w"], params["op_b"],
        out_dtype=query.dtype, mxu_dtype=jnp.bfloat16,
    ).reshape(N, Lq, C)


# ------------------------------------------------------------------ #
# Deterministic parameter init (mirrors MSDeformAttn._reset_parameters)
# Weights stored as (in, out): y = x @ W + b
# ------------------------------------------------------------------ #
def init_params(key, d_model, n_heads, n_levels, n_points):
    k1, k2 = jax.random.split(key)

    thetas = jnp.arange(n_heads, dtype=jnp.float32) * (2.0 * math.pi / n_heads)
    grid_init = jnp.stack([jnp.cos(thetas), jnp.sin(thetas)], -1)  # (H, 2)
    grid_init = grid_init / jnp.max(jnp.abs(grid_init), axis=-1, keepdims=True)
    grid_init = jnp.tile(grid_init.reshape(n_heads, 1, 1, 2), (1, n_levels, n_points, 1))
    scale = jnp.arange(1, n_points + 1, dtype=jnp.float32).reshape(1, 1, n_points, 1)
    grid_init = grid_init * scale

    bound = math.sqrt(6.0 / (d_model + d_model))  # xavier_uniform for square layers
    return {
        "so_w": jnp.zeros((d_model, n_heads * n_levels * n_points * 2), jnp.float32),
        "so_b": grid_init.reshape(-1).astype(jnp.float32),
        "aw_w": jnp.zeros((d_model, n_heads * n_levels * n_points), jnp.float32),
        "aw_b": jnp.zeros((n_heads * n_levels * n_points,), jnp.float32),
        "vp_w": jax.random.uniform(k1, (d_model, d_model), jnp.float32, -bound, bound),
        "vp_b": jnp.zeros((d_model,), jnp.float32),
        "op_w": jax.random.uniform(k2, (d_model, d_model), jnp.float32, -bound, bound),
        "op_b": jnp.zeros((d_model,), jnp.float32),
    }


# ------------------------------------------------------------------ #
# Pure numpy reference (independent of the kernels) for verification
# ------------------------------------------------------------------ #
def reference_forward_np(
    params, query, reference_points, input_flatten, spatial_shapes, level_start,
    n_heads, n_levels, n_points,
):
    p = {k: np.asarray(v) for k, v in params.items()}
    q = np.asarray(query)
    rp = np.asarray(reference_points)
    x = np.asarray(input_flatten)
    ss = np.asarray(spatial_shapes)
    ls = np.asarray(level_start)
    N, Lq, C = q.shape
    _, Len_in, _ = x.shape
    Dh = C // n_heads
    L, P = n_levels, n_points

    value = (x @ p["vp_w"] + p["vp_b"]).reshape(N, Len_in, n_heads, Dh)
    so = (q @ p["so_w"] + p["so_b"]).reshape(N, Lq, n_heads, L, P, 2)
    aw = (q @ p["aw_w"] + p["aw_b"]).reshape(N, Lq, n_heads, L * P)
    e = np.exp(aw - aw.max(-1, keepdims=True))
    aw = e / e.sum(-1, keepdims=True)

    norm = np.stack([ss[:, 1], ss[:, 0]], -1).astype(np.float32)  # (L, 2) = (W, H)
    loc = rp[:, :, None, :, None, :] + so / norm[None, None, None, :, None, :]

    out = np.zeros((N, Lq, n_heads, Dh), np.float32)
    for n in range(N):
        for qi in range(Lq):
            for h in range(n_heads):
                for l in range(L):
                    Hl, Wl = int(ss[l, 0]), int(ss[l, 1])
                    s0 = int(ls[l])
                    for pp in range(P):
                        lx, ly = float(loc[n, qi, h, l, pp, 0]), float(loc[n, qi, h, l, pp, 1])
                        xx = lx * Wl - 0.5
                        yy = ly * Hl - 0.5
                        x0 = math.floor(xx)
                        y0 = math.floor(yy)
                        dx = xx - x0
                        dy = yy - y0
                        acc = np.zeros(Dh, np.float32)
                        for (cy, cx, cw) in (
                            (y0, x0, (1 - dy) * (1 - dx)),
                            (y0, x0 + 1, (1 - dy) * dx),
                            (y0 + 1, x0, dy * (1 - dx)),
                            (y0 + 1, x0 + 1, dy * dx),
                        ):
                            if 0 <= cx < Wl and 0 <= cy < Hl:
                                acc += np.float32(cw) * value[n, s0 + cy * Wl + cx, h]
                        out[n, qi, h] += aw[n, qi, h, l * P + pp] * acc
    out = out.reshape(N, Lq, C)
    return out @ p["op_w"] + p["op_b"]


# ------------------------------------------------------------------ #
if __name__ == "__main__":
    # Small config: d_model=32, 2 levels, 4 heads, 2 points
    d_model, n_levels, n_heads, n_points = 32, 2, 4, 2
    N, Lq = 2, 8
    spatial_shapes = jnp.array([[4, 4], [2, 2]], jnp.int32)
    level_start = jnp.array([0, 16], jnp.int32)
    Len_in = 4 * 4 + 2 * 2  # 20

    key = jax.random.PRNGKey(0)
    kq, kr, kf, kp, kw1, kw2 = jax.random.split(key, 6)
    query = jax.random.normal(kq, (N, Lq, d_model), jnp.float32)
    reference_points = jax.random.uniform(kr, (N, Lq, n_levels, 2), jnp.float32)
    input_flatten = jax.random.normal(kf, (N, Len_in, d_model), jnp.float32)
    params = init_params(kp, d_model, n_heads, n_levels, n_points)
    # Perturb the (normally zero-initialized) offset / weight projections so the
    # test exercises query-dependent sampling locations and non-uniform softmax.
    params["so_w"] = 0.05 * jax.random.normal(kw1, params["so_w"].shape, jnp.float32)
    params["aw_w"] = 0.5 * jax.random.normal(kw2, params["aw_w"].shape, jnp.float32)

    out = ms_deform_attn_forward(
        params, query, reference_points, input_flatten,
        spatial_shapes, level_start, None,
        n_heads=n_heads, n_levels=n_levels, n_points=n_points,
    )
    out = jax.block_until_ready(out)

    ref = reference_forward_np(
        params, query, reference_points, input_flatten, spatial_shapes, level_start,
        n_heads, n_levels, n_points,
    )
    # bf16 MXU operands + bf16 sampling output + approx reciprocal -> loosened tol.
    np.testing.assert_allclose(np.asarray(out), ref, rtol=5e-2, atol=5e-2)
    print("KERNEL_OK")
</pallas_src>

<mosaic_0001>
module attributes {stable_mosaic.version = 11 : i64} {
  func.func @_linear_kernel(%arg0: i32, %arg1: memref<48x32xbf16, #tpu.memory_space<vmem>>, %arg2: memref<32x32xbf16, #tpu.memory_space<vmem>>, %arg3: memref<1x32xf32, #tpu.memory_space<vmem>>, %arg4: memref<48x32xbf16, #tpu.memory_space<vmem>>) attributes {dimension_semantics = [#tpu.dimension_semantics<parallel>], iteration_bounds = array<i64: 1>, scalar_prefetch = 0 : i64, scratch_operands = 0 : i64, tpu.core_type = #tpu.core_type<tc>, window_params = [{transform_indices = @transform_0, window_bounds = array<i64: 48, 32>}, {pipeline_mode = #tpu.pipeline_mode<synchronous>, transform_indices = @transform_1, window_bounds = array<i64: 32, 32>}, {pipeline_mode = #tpu.pipeline_mode<synchronous>, transform_indices = @transform_2, window_bounds = array<i64: 1, 32>}, {transform_indices = @transform_3, window_bounds = array<i64: 48, 32>}]} {
    %c0 = arith.constant 0 : index
    %c0_0 = arith.constant 0 : index
    %0 = vector.load %arg1[%c0, %c0_0] : memref<48x32xbf16, #tpu.memory_space<vmem>>, vector<48x32xbf16>
    %c0_1 = arith.constant 0 : index
    %c0_2 = arith.constant 0 : index
    %1 = vector.load %arg2[%c0_1, %c0_2] : memref<32x32xbf16, #tpu.memory_space<vmem>>, vector<32x32xbf16>
    %cst = arith.constant dense<0.000000e+00> : vector<48x32xf32>
    %2 = tpu.matmul %0, %1, %cst {dimension_numbers = #tpu.dot_dimension_numbers<[1], [0], [0], [1], [0, 0, 1, 1], [], []>} : vector<48x32xbf16>, vector<32x32xbf16>, vector<48x32xf32> -> vector<48x32xf32>
    %c0_3 = arith.constant 0 : index
    %c0_4 = arith.constant 0 : index
    %3 = vector.load %arg3[%c0_3, %c0_4] : memref<1x32xf32, #tpu.memory_space<vmem>>, vector<1x32xf32>
    %4 = vector.broadcast %3 : vector<1x32xf32> to vector<48x32xf32>
    %5 = arith.addf %2, %4 : vector<48x32xf32>
    %6 = arith.truncf %5 : vector<48x32xf32> to vector<48x32xbf16>
    %c0_5 = arith.constant 0 : index
    %c0_6 = arith.constant 0 : index
    %7 = vector.load %arg4[%c0_5, %c0_6] : memref<48x32xbf16, #tpu.memory_space<vmem>>, vector<48x32xbf16>
    tpu.vector_store %arg4[%c0_5, %c0_6], %6 {strides = array<i32>} : memref<48x32xbf16, #tpu.memory_space<vmem>>, vector<48x32xbf16>,
    return
  }
  func.func @transform_0(%arg0: i32) -> (i32, i32) {
    %c0_i32 = arith.constant 0 : i32
    %c0_i32_0 = arith.constant 0 : i32
    return %arg0, %c0_i32 : i32, i32
  }
  func.func @transform_1(%arg0: i32) -> (i32, i32) {
    %c0_i32 = arith.constant 0 : i32
    %c0_i32_0 = arith.constant 0 : i32
    %c0_i32_1 = arith.constant 0 : i32
    return %c0_i32, %c0_i32_0 : i32, i32
  }
  func.func @transform_2(%arg0: i32) -> (i32, i32) {
    %c0_i32 = arith.constant 0 : i32
    %c0_i32_0 = arith.constant 0 : i32
    %c0_i32_1 = arith.constant 0 : i32
    return %c0_i32, %c0_i32_0 : i32, i32
  }
  func.func @transform_3(%arg0: i32) -> (i32, i32) {
    %c0_i32 = arith.constant 0 : i32
    %c0_i32_0 = arith.constant 0 : i32
    return %arg0, %c0_i32 : i32, i32
  }
}

</mosaic_0001>

<llo_original>
// kernel: tpu_custom_call.1
$region0: #{tpu_custom_call.1}
  #allocation0 [shape = 'u32[]', space=smem, size = 0x4, offset = 0x4, fixed_abs, tag = 'smem constant byte address 0x4 - core index']
  #allocation1 [shape = 'u32[72,128]{1,0:T(1,128)}', space=vmem, size = 0x9000, scoped, tag = 'internal scratch']
  %s0 = inlined_call_operand.vmem [shape: bf16[48,32], index: 0, kind: input, shape index: {}]
  %s1 = inlined_call_operand.vmem [shape: bf16[32,32], index: 1, kind: input, shape index: {}]
  %s2 = inlined_call_operand.vmem [shape: f32[1,32], index: 2, kind: input, shape index: {}]
  %s3 = inlined_call_operand.vmem [shape: bf16[48,32], index: 3, kind: output, shape index: {}]
  %s4 = sld [smem:[#allocation0]]
  $region22: #{tpu_custom_call.1} parent=0
    _
  %s6 = ssub.s32 1, %s4
  %s7 = scalar_select 0, %s6, %s4
  // Predicated region
  $region2: #{tpu_custom_call.1} parent=0 // pred_check
    _
  $region3: #{tpu_custom_call.1} parent=0 // pred_check_branch
    %9 = sbr.rel (0) target = $region5
  $region4: #{tpu_custom_call.1} parent=0 // pred_region
    _
  $region5: #{tpu_custom_call.1} parent=0 // pred_fallthru
    _
  // Predicated region
  $region6: #{tpu_custom_call.1} parent=0 // pred_check
    _
  $region7: #{tpu_custom_call.1} parent=0 // pred_check_branch
    %11 = sbr.rel (0) target = $region9
  $region8: #{tpu_custom_call.1} parent=0 // pred_region
    _
  $region9: #{tpu_custom_call.1} parent=0 // pred_fallthru
    _
  // Predicated region
  $region10: #{tpu_custom_call.1} parent=0 // pred_check
    _
  $region11: #{tpu_custom_call.1} parent=0 // pred_check_branch
    %13 = sbr.rel (0) target = $region13
  $region12: #{tpu_custom_call.1} parent=0 // pred_region
    _
  $region13: #{tpu_custom_call.1} parent=0 // pred_fallthru
    _
  %v15 = vld [vmem:[%s0] sm:$0xf]
  %v16 = vld [vmem:[%s0 + $0x4] sm:$0xf]
  %v17 = vld [vmem:[%s0 + $0x8] sm:$0xf]
  %v18 = vld [vmem:[%s0 + $0xc] sm:$0xf]
  %v19 = vld [vmem:[%s0 + $0x10] sm:$0xf]
  %v20 = vld [vmem:[%s0 + $0x14] sm:$0xf]
  %v21 = vld [vmem:[%s1] sm:$0xf]
  %v22 = vld [vmem:[%s1 + $0x4] sm:$0xf]
  %v23 = vld [vmem:[%s1 + $0x8] sm:$0xf]
  %v24 = vld [vmem:[%s1 + $0xc] sm:$0xf]
  %v25 = vld [vmem:[%s2] sm:$0x1]
  %v27 = vperm.slane %v25, 0
  %v35 = vunpack.c.l.b16 %v15
  %v36 = vunpack.c.l.b16 %v16
  %v37 = vunpack.c.l.b16 %v17
  %v38 = vunpack.c.l.b16 %v18
  %v39 = vunpack.c.l.b16 %v19
  %v40 = vunpack.c.l.b16 %v20
  %v41 = vpack.c.b16 %v36, %v35
  %v42 = vpack.c.b16 %v38, %v37
  %v43 = vpack.c.b16 %v40, %v39
  %v48 = vunpack.c.l.b16 %v21
  %v49 = vunpack.c.l.b16 %v22
  %v50 = vunpack.c.l.b16 %v23
  %v51 = vunpack.c.l.b16 %v24
  %v52 = vpack.c.b16 %v49, %v48
  %v53 = vpack.c.b16 %v51, %v50
  %vm56 = vcmask 261120
  %v58 = vsel %vm56, %v41, 0
  %v61 = vsel %vm56, %v42, 0
  %v64 = vsel %vm56, %v43, 0
  %66 = vmatpush.bf16.msra.mxu0 0
  %67 = vmatpush.bf16.msra.mxu0 0
  %68 = vmatpush.bf16.msra.mxu0 0
  %69 = vmatpush.bf16.msra.mxu0 0
  %70 = vmatpush.bf16.msra.mxu0 0
  %71 = vmatpush.bf16.msra.mxu0 0
  %72 = vmatpush.bf16.msra.mxu0 %v53
  %73 = vmatpush.bf16.msra.mxu0 %v52
  %74 = vmatmul.bf16.gmra.mxu0 %v58
  %v75 = vpop.f32.mrf.mxu0
  %v76 = vadd.f32 %v27, %v75
  %v77 = vpop.f32.mrf.mxu0
  %v78 = vadd.f32 %v27, %v77
  %79 = vmatmul.bf16.gmra.mxu0 %v61
  %v80 = vpop.f32.mrf.mxu0
  %v81 = vadd.f32 %v27, %v80
  %v82 = vpop.f32.mrf.mxu0
  %v83 = vadd.f32 %v27, %v82
  %84 = vmatmul.bf16.gmra.mxu0 %v64
  %v85 = vpop.f32.mrf.mxu0
  %v86 = vadd.f32 %v27, %v85
  %v87 = vpop.f32.mrf.mxu0
  %v88 = vadd.f32 %v27, %v87
  %89 = vdwg.mxu0
  %v90 = vpack.c.bf16 %v76, %v76
  %v91 = vpack.c.bf16 %v78, %v78
  %v92 = vpack.c.bf16 %v81, %v81
  %v93 = vpack.c.bf16 %v83, %v83
  %v94 = vpack.c.bf16 %v86, %v86
  %v95 = vpack.c.bf16 %v88, %v88
  %vm96 = vcmask 257024
  %97 = vst.msk [vmem:[%s3] sm:$0xf] %vm96, %v90
  %98 = vst.msk [vmem:[%s3 + $0x4] sm:$0xf] %vm96, %v91
  %99 = vst.msk [vmem:[%s3 + $0x8] sm:$0xf] %vm96, %v92
  %100 = vst.msk [vmem:[%s3 + $0xc] sm:$0xf] %vm96, %v93
  %101 = vst.msk [vmem:[%s3 + $0x10] sm:$0xf] %vm96, %v94
  %102 = vst.msk [vmem:[%s3 + $0x14] sm:$0xf] %vm96, %v95
  // Predicated region
  $region14: #{tpu_custom_call.1} parent=0 // pred_check
    _
  $region15: #{tpu_custom_call.1} parent=0 // pred_check_branch
    %104 = sbr.rel (0) target = $region17
  $region16: #{tpu_custom_call.1} parent=0 // pred_region
    _
  $region17: #{tpu_custom_call.1} parent=0 // pred_fallthru
    _
  // Predicated region
  $region18: #{tpu_custom_call.1} parent=0 // pred_check
    _
  $region19: #{tpu_custom_call.1} parent=0 // pred_check_branch
    %106 = sbr.rel (0) target = $region21
  $region20: #{tpu_custom_call.1} parent=0 // pred_region
    _
  $region21: #{tpu_custom_call.1} parent=0 // pred_fallthru
    _

</llo_original>
